<compile_context>
chip_gen: v6e
topology: v6e:2x2x1
jax: 0.10.0
libtpu: 0.0.40
codegen_flags: <defaults>
</compile_context>

<pallas_src>
import functools

import jax
import jax.numpy as jnp
from jax.experimental import pallas as pl
from jax.experimental.pallas import tpu as pltpu


def _round_up(x: int, m: int) -> int:
    return ((x + m - 1) // m) * m


def _ipow(x, n: int):
    """x**n for a positive Python int n via repeated multiplies (VPU only)."""
    assert n >= 1
    result = None
    p = x
    while n:
        if n & 1:
            result = p if result is None else result * p
        n >>= 1
        if n:
            p = p * p
    return result


def _asl_kernel(logits_ref, target_ref, partial_ref, *,
                gamma_pos, gamma_neg, eps, n_valid, tile_n):
    x = logits_ref[...].astype(jnp.float32)             # (tn, C)
    tn, c = x.shape

    # log-softmax along the class (lane) dim; exp(z) is reused for the
    # probabilities so only ONE full-width transcendental is issued.
    m = jnp.max(x, axis=-1, keepdims=True)
    z = x - m
    e = jnp.exp(z)                                       # single full-width exp
    s = jnp.sum(e, axis=-1, keepdims=True)               # (tn, 1)
    log_preds = z - jnp.log(s)                           # (tn, C)

    # 1/s on the EUP (approx) + one Newton step to restore ~f32 accuracy;
    # (tn, 1)-shaped, so it is basically free but stays off the VALU slots.
    r = pl.reciprocal(s, approx=True)
    inv_s = r * (2.0 - s * r)
    xs_pos = e * inv_s                                    # softmax probs, no 2nd exp

    # one-hot membership via iota compare (torch scatter_ equivalent), kept as
    # a bool predicate; all downstream algebra is fused into selects.
    cls_ids = jax.lax.broadcasted_iota(jnp.int32, (tn, c), 1)
    tgt_hit = cls_ids == target_ref[...]                  # (tn, C) bool

    # base = 1 - xs_pos*t - xs_neg*(1-t)  ==  where(t, 1 - xs_pos, xs_pos)
    base = jnp.where(tgt_hit, 1.0 - xs_pos, xs_pos)

    # Fused label smoothing + asymmetric focusing weight:
    #   coef = where(hit, (1-eps+eps/C) * base**gamma_pos,
    #                     (eps/C)       * base**gamma_neg)
    pos_coef = 1.0 - eps + eps / c
    neg_coef = eps / c
    int_gammas = (float(gamma_pos).is_integer() and float(gamma_neg).is_integer()
                  and gamma_pos >= 0 and gamma_neg >= 0)
    if int_gammas:
        gp, gn = int(gamma_pos), int(gamma_neg)
        # gamma == 0 folds to the scalar coefficient (matches torch.pow 0**0 == 1,
        # and avoids a ones_like broadcast + extra where operand).
        pos_branch = pos_coef if gp == 0 else pos_coef * _ipow(base, gp)
        neg_branch = neg_coef if gn == 0 else neg_coef * _ipow(base, gn)
        coef = jnp.where(tgt_hit, pos_branch, neg_branch)
    else:
        gamma = jnp.where(tgt_hit, gamma_pos, gamma_neg)
        # exp(g*log(base)); clamp avoids log(0) and keeps 0**0 == 1 for g == 0.
        w = jnp.exp(gamma * jnp.log(jnp.maximum(base, 1e-12)))
        coef = jnp.where(tgt_hit, pos_coef, neg_coef) * w

    prod = coef * log_preds                               # (tn, C)

    # mask batch-padding rows (only emitted when padding was required).
    if n_valid % tile_n != 0:
        i = pl.program_id(0)
        rows = jax.lax.broadcasted_iota(jnp.int32, (tn, 1), 0) + i * tile_n
        prod = jnp.where(rows < n_valid, prod, 0.0)

    # sublane-only reduce; lane reduce, negation and the batch mean are done
    # outside the kernel on the tiny (num_tiles, 1, C) partial-sum array.
    partial_ref[0] = jnp.sum(prod, axis=0, keepdims=True)


def asl_single_label_loss(logits, target, *, gamma_pos=0.0, gamma_neg=4.0,
                          eps=0.1, tile_n=None,
                          vmem_budget_bytes=16 * 1024 * 1024):
    """Pallas implementation of ASLSingleLabel.forward with reduction='mean'."""
    n, c = logits.shape

    if tile_n is None:
        # The kernel keeps ~8 (tile_n, C) f32 intermediates live (z, e,
        # log_preds, xs_pos, base, pow chain, coef, prod) on top of the
        # double-buffered input block, so budget against 8*tile_n*C*4 bytes.
        # ~16 MiB of live temps + a few MiB of pipeline buffers fits v5e/v6e
        # scoped VMEM and v7x's 64 MiB physical VMEM with headroom.
        budget_rows = max(8, vmem_budget_bytes // (8 * 4 * c))
        tile_n = max(8, min(1024, (budget_rows // 8) * 8))
        # Megacore (v7x has 2 TensorCores): keep >= 2 grid steps so the
        # "parallel" grid axis actually shards across both cores.
        if n > 8:
            tile_n = min(tile_n, _round_up(-(-n // 2), 8))
        tile_n = min(tile_n, _round_up(n, 8))

    num_tiles = -(-n // tile_n)
    n_pad = num_tiles * tile_n

    target2d = target.astype(jnp.int32).reshape(n, 1)
    if n_pad != n:
        logits = jnp.pad(logits, ((0, n_pad - n), (0, 0)))
        target2d = jnp.pad(target2d, ((0, n_pad - n), (0, 0)))

    kernel = functools.partial(
        _asl_kernel,
        gamma_pos=float(gamma_pos),
        gamma_neg=float(gamma_neg),
        eps=float(eps),
        n_valid=n,
        tile_n=tile_n,
    )

    cost = pl.CostEstimate(
        flops=int(14 * n_pad * c),
        transcendentals=int(n_pad * c + 2 * n_pad),
        bytes_accessed=int(n_pad * c * 4 + n_pad * 4 + num_tiles * c * 4),
    )

    # TODO(synk): tile the class dimension (two-pass / online-LSE over C chunks)
    # for vocab-scale C where even an (8, C) block exceeds the VMEM budget.
    # TODO(synk): for C far below 128 lanes the vregs stay lane-sparse; packing
    # 128//C logical rows per physical row + segmented reductions would recover
    # up to 128/C of VPU throughput and VMEM footprint.
    # TODO(synk): on v5e (HBM-bound after the VALU trims) pipeline_mode=
    # pl.Buffered(3) on the logits in_spec may recover a further ~10% of the
    # memory roofline.
    partials = pl.pallas_call(
        kernel,
        out_shape=jax.ShapeDtypeStruct((num_tiles, 1, c), jnp.float32),
        grid_spec=pltpu.PrefetchScalarGridSpec(
            num_scalar_prefetch=0,
            grid=(num_tiles,),
            in_specs=[
                pl.BlockSpec((tile_n, c), lambda i: (i, 0)),
                pl.BlockSpec((tile_n, 1), lambda i: (i, 0)),
            ],
            out_specs=pl.BlockSpec((1, 1, c), lambda i: (i, 0, 0)),
        ),
        compiler_params=pltpu.CompilerParams(
            dimension_semantics=("parallel",),
            vmem_limit_bytes=32 * 1024 * 1024,
        ),
        cost_estimate=cost,
    )(logits, target2d)

    # reduction='mean' over the true batch size.
    return -jnp.sum(partials) / jnp.float32(n)


def _reference(logits, target, gamma_pos=0.0, gamma_neg=4.0, eps=0.1):
    """Pure-JAX reference mirroring the PyTorch module."""
    n, c = logits.shape
    log_preds = jax.nn.log_softmax(logits, axis=-1)
    targets = jax.nn.one_hot(target, c, dtype=logits.dtype)
    anti = 1.0 - targets
    xs_pos = jnp.exp(log_preds)
    xs_neg = 1.0 - xs_pos
    asym_w = jnp.power(1.0 - xs_pos * targets - xs_neg * anti,
                       gamma_pos * targets + gamma_neg * anti)
    log_preds = log_preds * asym_w
    tgt = targets * (1.0 - eps) + eps / c
    loss = -(tgt * log_preds).sum(axis=-1)
    return loss.mean()


if __name__ == "__main__":
    key = jax.random.PRNGKey(0)
    k1, k2, k3, k4 = jax.random.split(key, 4)

    # small shapes: batch=16, num_classes=32 (two grid tiles -> megacore path)
    N, C = 16, 32
    logits = jax.random.normal(k1, (N, C), dtype=jnp.float32)
    target = jax.random.randint(k2, (N,), 0, C, dtype=jnp.int32)

    loss = asl_single_label_loss(logits, target)
    jax.block_until_ready(loss)
    ref = _reference(logits, target)
    assert jnp.allclose(loss, ref, rtol=1e-5, atol=1e-5), (loss, ref)

    # uneven batch exercises the padded-row mask path
    N2, C2 = 13, 32
    logits2 = jax.random.normal(k3, (N2, C2), dtype=jnp.float32)
    target2 = jax.random.randint(k4, (N2,), 0, C2, dtype=jnp.int32)
    loss2 = asl_single_label_loss(logits2, target2)
    jax.block_until_ready(loss2)
    ref2 = _reference(logits2, target2)
    assert jnp.allclose(loss2, ref2, rtol=1e-5, atol=1e-5), (loss2, ref2)

    print("KERNEL_OK")
</pallas_src>

<mosaic_0001>
module attributes {stable_mosaic.version = 11 : i64} {
  func.func @_asl_kernel(%arg0: i32, %arg1: memref<8x32xf32, #tpu.memory_space<vmem>>, %arg2: memref<8x1xi32, #tpu.memory_space<vmem>>, %arg3: memref<1x1x32xf32, #tpu.memory_space<vmem>>) attributes {dimension_semantics = [#tpu.dimension_semantics<parallel>], iteration_bounds = array<i64: 2>, scalar_prefetch = 0 : i64, scratch_operands = 0 : i64, tpu.core_type = #tpu.core_type<tc>, window_params = [{transform_indices = @transform_0, window_bounds = array<i64: 8, 32>}, {transform_indices = @transform_1, window_bounds = array<i64: 8, 1>}, {transform_indices = @transform_2, window_bounds = array<i64: 1, 1, 32>}]} {
    %c0 = arith.constant 0 : index
    %c0_0 = arith.constant 0 : index
    %0 = vector.load %arg1[%c0, %c0_0] : memref<8x32xf32, #tpu.memory_space<vmem>>, vector<8x32xf32>
    %cst = arith.constant dense<0xFF800000> : vector<8xf32>
    %1 = vector.multi_reduction <maximumf>, %0, %cst [1] : vector<8x32xf32> to vector<8xf32>
    %2 = vector.shape_cast %1 : vector<8xf32> to vector<8x1xf32>
    %3 = vector.broadcast %2 : vector<8x1xf32> to vector<8x32xf32>
    %4 = arith.subf %0, %3 : vector<8x32xf32>
    %5 = math.exp %4 : vector<8x32xf32>
    %cst_1 = arith.constant dense<0.000000e+00> : vector<8xf32>
    %6 = vector.multi_reduction <add>, %5, %cst_1 [1] : vector<8x32xf32> to vector<8xf32>
    %7 = vector.shape_cast %6 : vector<8xf32> to vector<8x1xf32>
    %8 = math.log %7 : vector<8x1xf32>
    %9 = vector.broadcast %8 : vector<8x1xf32> to vector<8x32xf32>
    %10 = arith.subf %4, %9 : vector<8x32xf32>
    %11 = tpu.reciprocal %7 {approx = true} : vector<8x1xf32> -> vector<8x1xf32>
    %12 = arith.mulf %7, %11 : vector<8x1xf32>
    %cst_2 = arith.constant 2.000000e+00 : f32
    %13 = vector.broadcast %cst_2 : f32 to vector<8x1xf32>
    %14 = arith.subf %13, %12 : vector<8x1xf32>
    %15 = arith.mulf %11, %14 : vector<8x1xf32>
    %16 = vector.broadcast %15 : vector<8x1xf32> to vector<8x32xf32>
    %17 = arith.mulf %5, %16 : vector<8x32xf32>
    %18 = tpu.iota {dimensions = array<i32: 1>} : vector<8x32xi32>
    %c0_3 = arith.constant 0 : index
    %c0_4 = arith.constant 0 : index
    %19 = vector.load %arg2[%c0_3, %c0_4] : memref<8x1xi32, #tpu.memory_space<vmem>>, vector<8x1xi32>
    %20 = vector.broadcast %19 : vector<8x1xi32> to vector<8x32xi32>
    %21 = arith.cmpi eq, %18, %20 : vector<8x32xi32>
    %cst_5 = arith.constant 1.000000e+00 : f32
    %22 = vector.broadcast %cst_5 : f32 to vector<8x32xf32>
    %23 = arith.subf %22, %17 : vector<8x32xf32>
    %24 = arith.select %21, %23, %17 : vector<8x32xi1>, vector<8x32xf32>
    %25 = arith.mulf %24, %24 : vector<8x32xf32>
    %26 = arith.mulf %25, %25 : vector<8x32xf32>
    %cst_6 = arith.constant 3.125000e-03 : f32
    %27 = vector.broadcast %cst_6 : f32 to vector<8x32xf32>
    %28 = arith.mulf %27, %26 : vector<8x32xf32>
    %cst_7 = arith.constant 0.903124988 : f32
    %29 = vector.broadcast %cst_7 : f32 to vector<8x32xf32>
    %30 = arith.select %21, %29, %28 : vector<8x32xi1>, vector<8x32xf32>
    %31 = arith.mulf %30, %10 : vector<8x32xf32>
    %cst_8 = arith.constant dense<0.000000e+00> : vector<32xf32>
    %32 = vector.multi_reduction <add>, %31, %cst_8 [0] : vector<8x32xf32> to vector<32xf32>
    %33 = vector.shape_cast %32 : vector<32xf32> to vector<1x32xf32>
    %c0_9 = arith.constant 0 : index
    %c0_10 = arith.constant 0 : index
    %c0_11 = arith.constant 0 : index
    %34 = vector.load %arg3[%c0_9, %c0_10, %c0_11] : memref<1x1x32xf32, #tpu.memory_space<vmem>>, vector<1x1x32xf32>
    %35 = vector.shape_cast %34 : vector<1x1x32xf32> to vector<1x32xf32>
    %36 = vector.shape_cast %33 : vector<1x32xf32> to vector<1x1x32xf32>
    tpu.vector_store %arg3[%c0_9, %c0_10, %c0_11], %36 {strides = array<i32>} : memref<1x1x32xf32, #tpu.memory_space<vmem>>, vector<1x1x32xf32>,
    return
  }
  func.func @transform_0(%arg0: i32) -> (i32, i32) {
    %c0_i32 = arith.constant 0 : i32
    %c0_i32_0 = arith.constant 0 : i32
    return %arg0, %c0_i32 : i32, i32
  }
  func.func @transform_1(%arg0: i32) -> (i32, i32) {
    %c0_i32 = arith.constant 0 : i32
    %c0_i32_0 = arith.constant 0 : i32
    return %arg0, %c0_i32 : i32, i32
  }
  func.func @transform_2(%arg0: i32) -> (i32, i32, i32) {
    %c0_i32 = arith.constant 0 : i32
    %c0_i32_0 = arith.constant 0 : i32
    %c0_i32_1 = arith.constant 0 : i32
    return %arg0, %c0_i32, %c0_i32_0 : i32, i32, i32
  }
}

</mosaic_0001>

<llo_original>
// kernel: tpu_custom_call.1
$region0: #{tpu_custom_call.1}
  #allocation0 [shape = 'u32[]', space=smem, size = 0x4, offset = 0x4, fixed_abs, tag = 'smem constant byte address 0x4 - core index']
  #allocation1 [shape = 'u32[144,128]{1,0:T(1,128)}', space=vmem, size = 0x12000, scoped, tag = 'internal scratch']
  %s0 = inlined_call_operand.vmem [shape: f32[16,32], index: 0, kind: input, shape index: {}]
  %s1 = inlined_call_operand.vmem [shape: s32[16,1], index: 1, kind: input, shape index: {}]
  %s2 = inlined_call_operand.hbm [shape: f32[2,1,32], index: 2, kind: output, shape index: {}]
  %s3 = sld [smem:[#allocation0]]
  $region41: #{tpu_custom_call.1} parent=0
    _
  %s5 = ssub.s32 1, %s3
  %s6 = scalar_select 0, %s5, %s3
  $region1: #{tpu_custom_call.1} parent=0
    #allocation2 [shape = 'u8[1024]{0}', space=vmem, size = 0x400, scoped, tag = 'output window, operand 0']
    #allocation3 [shape = 's32[2]{0}', space=sflag, size = 0x8, scoped, tag = 'scoped memory for tpu_custom_call.1']
    %7 = vsyncpa [#allocation3], 0
    %s8 = scalar_lea.sflag [#allocation3], 1
    %9 = vsyncpa %s8, 0
    loop: start=0, step=1, limit=4
    $region2: #{tpu_custom_call.1} parent=1 // loop_pre_header
      _
    $region3: #{tpu_custom_call.1} parent=1 // loop_header
      %s11 = sphi 0, %s15
      %p12 = scmp.ge.s32.totalorder %s11, 4
      %s21 = sphi 0, %s23
      %s24 = sphi 0, %s21
      %s25 = sphi 0, %s24
      %s41 = sphi 0, %s25
      %s47 = sphi 0, %s49
      %s50 = sphi 0, %s47
      %s51 = sphi 0, %s50
      %s67 = sphi 0, %s51
      %s73 = sphi 0, %s75
      %s76 = sphi 0, %s73
      %s77 = sphi 0, %s76
      %s93 = sphi 0, %s77
    $region4: #{tpu_custom_call.1} parent=1 // loop_header_branch
      %14 = sbr.rel (%p12) target = $region8
    $region5: #{tpu_custom_call.1} parent=1 // loop_body
      %s16 = ssub.s32 %s11, 1
      %s17 = ssub.s32 %s11, 2
      %s18 = sadd.s32 %s11, 1
      %s19 = ssub.s32 %s11, %s18
      %p20 = scmp.eq.s32.totalorder %s19, 0
      %s22 = sadd.s32 %s21, 1
      %s23 = scalar_select %p20, %s21, %s22
      %p26 = pneg %p20
      %p27 = scmp.eq.s32.totalorder %s11, 1
      %p28 = por %p26, %p27
      %p29 = scmp.ne.s32.totalorder %s21, %s24
      %p30 = scmp.eq.s32.totalorder %s11, 0
      %p31 = por %p29, %p30
      %p32 = scmp.ne.s32.totalorder %s21, %s24
      %p33 = scmp.eq.s32.totalorder %s16, 1
      %p34 = por %p32, %p33
      %p35 = scmp.ne.s32.totalorder %s24, %s25
      %p36 = scmp.eq.s32.totalorder %s16, 0
      %p37 = por %p35, %p36
      %p38 = scmp.ne.s32.totalorder %s24, %s25
      %p39 = scmp.eq.s32.totalorder %s17, 1
      %p40 = por %p38, %p39
      %p42 = scmp.ne.s32.totalorder %s25, %s41
      %p43 = scmp.eq.s32.totalorder %s17, 0
      %p44 = por %p42, %p43
      %s45 = ssub.s32 %s11, %s18
      %p46 = scmp.eq.s32.totalorder %s45, 0
      %s48 = sadd.s32 %s47, 1
      %s49 = scalar_select %p46, %s47, %s48
      %p52 = pneg %p46
      %p53 = scmp.eq.s32.totalorder %s11, 1
      %p54 = por %p52, %p53
      %p55 = scmp.ne.s32.totalorder %s47, %s50
      %p56 = scmp.eq.s32.totalorder %s11, 0
      %p57 = por %p55, %p56
      %p58 = scmp.ne.s32.totalorder %s47, %s50
      %p59 = scmp.eq.s32.totalorder %s16, 1
      %p60 = por %p58, %p59
      %p61 = scmp.ne.s32.totalorder %s50, %s51
      %p62 = scmp.eq.s32.totalorder %s16, 0
      %p63 = por %p61, %p62
      %p64 = scmp.ne.s32.totalorder %s50, %s51
      %p65 = scmp.eq.s32.totalorder %s17, 1
      %p66 = por %p64, %p65
      %p68 = scmp.ne.s32.totalorder %s51, %s67
      %p69 = scmp.eq.s32.totalorder %s17, 0
      %p70 = por %p68, %p69
      %s71 = ssub.s32 %s11, %s18
      %p72 = scmp.eq.s32.totalorder %s71, 0
      %s74 = sadd.s32 %s73, 1
      %s75 = scalar_select %p72, %s73, %s74
      %p78 = pneg %p72
      %p79 = scmp.eq.s32.totalorder %s11, 1
      %p80 = por %p78, %p79
      %p81 = scmp.ne.s32.totalorder %s73, %s76
      %p82 = scmp.eq.s32.totalorder %s11, 0
      %p83 = por %p81, %p82
      %p84 = scmp.ne.s32.totalorder %s73, %s76
      %p85 = scmp.eq.s32.totalorder %s16, 1
      %p86 = por %p84, %p85
      %p87 = scmp.ne.s32.totalorder %s76, %s77
      %p88 = scmp.eq.s32.totalorder %s16, 0
      %p89 = por %p87, %p88
      %p90 = scmp.ne.s32.totalorder %s76, %s77
      %p91 = scmp.eq.s32.totalorder %s17, 1
      %p92 = por %p90, %p91
      %p94 = scmp.ne.s32.totalorder %s77, %s93
      %p95 = scmp.eq.s32.totalorder %s17, 0
      %p96 = por %p94, %p95
      %p97 = scmp.le.s32.totalorder 1, %s11
      %p98 = scmp.lt.s32.totalorder %s11, 3
      %p99 = pnand %p97, %p98
      %p100 = pneg %p99
      // Predicated region
      $region9: #{tpu_custom_call.1} parent=5 // pred_check
        _
      $region10: #{tpu_custom_call.1} parent=5 // pred_check_branch
        %102 = sbr.rel (%p99) target = $region12
      $region11: #{tpu_custom_call.1} parent=5 // pred_region
        %s103 = ssub.s32 %s11, 1
      $region12: #{tpu_custom_call.1} parent=5 // pred_fallthru
        _
      %p104 = scmp.lt.s32.totalorder %s11, 2
      // Predicated region
      $region13: #{tpu_custom_call.1} parent=5 // pred_check
        %p105 = pneg %p104
      $region14: #{tpu_custom_call.1} parent=5 // pred_check_branch
        %107 = sbr.rel (%p105) target = $region16
      $region15: #{tpu_custom_call.1} parent=5 // pred_region
        // Predicated region
        $region17: #{tpu_custom_call.1} parent=15 // pred_check
          %p108 = pneg %p31
        $region18: #{tpu_custom_call.1} parent=15 // pred_check_branch
          %110 = sbr.rel (%p108) target = $region20
        $region19: #{tpu_custom_call.1} parent=15 // pred_region
          %p111 = scmp.lt.s32.totalorder %s11, 1
          %s112 = scalar_select %p111, %s11, 1
          %s113 = smul.addr %s112, 8
          %s114 = scalar_lea.vmem %s0, %s113
        $region20: #{tpu_custom_call.1} parent=15 // pred_fallthru
          _
        // Predicated region
        $region21: #{tpu_custom_call.1} parent=15 // pred_check
          %p115 = pneg %p57
        $region22: #{tpu_custom_call.1} parent=15 // pred_check_branch
          %117 = sbr.rel (%p115) target = $region24
        $region23: #{tpu_custom_call.1} parent=15 // pred_region
          %p118 = scmp.lt.s32.totalorder %s11, 1
          %s119 = scalar_select %p118, %s11, 1
          %s120 = smul.addr %s119, 8
          %s121 = scalar_lea.vmem %s1, %s120
        $region24: #{tpu_custom_call.1} parent=15 // pred_fallthru
          _
      $region16: #{tpu_custom_call.1} parent=5 // pred_fallthru
        _
      %p122 = scmp.le.s32.totalorder 1, %s11
      %p123 = scmp.lt.s32.totalorder %s11, 3
      %p124 = pnand %p122, %p123
      %p125 = pneg %p124
      // Predicated region
      $region25: #{tpu_custom_call.1} parent=5 // pred_check
        _
      $region26: #{tpu_custom_call.1} parent=5 // pred_check_branch
        %127 = sbr.rel (%p124) target = $region28
      $region27: #{tpu_custom_call.1} parent=5 // pred_region
        %s128 = ssub.s32 %s11, 1
        %p129 = scmp.lt.s32.totalorder %s16, 1
        %s130 = scalar_select %p129, %s16, 1
        %s131 = smul.addr %s130, 8
        %s132 = scalar_lea.vmem %s0, %s131
        %p133 = pneg %p37
        %p134 = pneg %p34
        %p135 = scmp.lt.s32.totalorder %s16, 1
        %s136 = scalar_select %p135, %s16, 1
        %s137 = smul.addr %s136, 8
        %s138 = scalar_lea.vmem %s1, %s137
        %p139 = pneg %p63
        %p140 = pneg %p60
        %p141 = pneg %p89
        %p142 = pneg %p86
        %s143 = sand.u32 %s76, 1
        %s144 = scalar_lea.sflag [#allocation3], %s143
        %s145 = sand.u32 %s76, 1
        %s146 = scalar_lea.vmem [#allocation2], %s145
        %p147 = scmp.lt.s32.totalorder %s16, 1
        %s148 = scalar_select %p147, %s16, 1
        %s149 = smul.addr %s148, 8
        %s150 = scalar_lea.vmem %s0, %s149
        %p151 = scmp.lt.s32.totalorder %s16, 1
        %s152 = scalar_select %p151, %s16, 1
        %s153 = smul.addr %s152, 8
        %s154 = scalar_lea.vmem %s1, %s153
        %v155 = vld [vmem:[%s150] sm:$0xff]
        %vm156 = vcmask 261120
        %v157 = vsel %vm156, %v155, -inf
        %158 = vmax.xlane.f32.xlu0 %v157
        %v159 = vpop.xlane.xlu0 %158
        %v160 = vsub.f32 %v155, %v159
        %v161 = vmul.f32 %v160, 1.442695
        %v162 = vpow.pop %v161
        %v163 = vsel %vm156, %v162, 0.0
        %164 = vadd.xlane.f32.xlu0 %v163
        %v165 = vpop.xlane.xlu0 %164
        %v166 = vlog2.pop %v165
        %v167 = vmul.f32 %v166, 0.6931472
        %v168 = vsub.f32 %v160, %v167
        %v169 = vrcp.pop %v165
        %v170 = vmul.f32 %v165, %v169
        %v171 = vsub.f32 2.0, %v170
        %v172 = vmul.f32 %v169, %v171
        %v173 = vmul.f32 %v162, %v172
        %v174 = vlaneseq
        %v175 = vand.u32 %v174, 127
        %v176 = vld [vmem:[%s154] sm:$0xff]
        %177 = vset.pattern.permute.xlu0 0
        %178 = vperm.xlu0 %177, %v176
        %v179 = vpop.permute.xlu0 %178
        %vm180 = vcmp.eq.s32.totalorder %v175, %v179
        %v181 = vsub.f32 1.0, %v173
        %v182 = vsel %vm180, %v181, %v173
        %v183 = vmul.f32 %v182, %v182
        %v184 = vmul.f32 %v183, %v183
        %v185 = vmul.f32 %v184, 0.003125
        %v186 = vsel %vm180, 0.903125, %v185
        %v187 = vmul.f32 %v186, %v168
        %v188 = vsel %vm156, %v187, 0.0
        %v189 = vrot.slane %v188, 4
        %v190 = vadd.f32 %v188, %v189
        %v191 = vrot.slane %v190, 2
        %v192 = vadd.f32 %v190, %v191
        %v193 = vrot.slane %v192, 1
        %v194 = vadd.f32 %v192, %v193
        %vm195 = vcmask 253952
        %196 = vst.msk [vmem:[%s146] sm:$0x1] %vm195, %v194
        %s197 = sand.u32 %s76, 1
        %s198 = scalar_lea.sflag [#allocation3], %s197
        %s199 = sand.u32 %s76, 1
        %s200 = scalar_lea.vmem [#allocation2], %s199
        // Predicated region
        $region29: #{tpu_custom_call.1} parent=27 // pred_check
          %p201 = pneg %p86
        $region30: #{tpu_custom_call.1} parent=27 // pred_check_branch
          %203 = sbr.rel (%p201) target = $region32
        $region31: #{tpu_custom_call.1} parent=27 // pred_region
          %s205 = ssub.s32 16, 16
          %206 = vsyncadd %s198, %s205
          %s207 = smul.addr %s16, 16
          %s208 = scalar_lea.hbm %s2, %s207
          %s210 = sshll.u32 %s200, 4
          %s211 = int_to_ptr.vmem [resolvable:$true] %s210
          %213 = dma.vmem_to_hbm [thread:$0]  %s211, 16, %s208, %s198
        $region32: #{tpu_custom_call.1} parent=27 // pred_fallthru
          _
      $region28: #{tpu_custom_call.1} parent=5 // pred_fallthru
        _
      %p214 = scmp.le.s32.totalorder 2, %s11
      // Predicated region
      $region33: #{tpu_custom_call.1} parent=5 // pred_check
        %p215 = pneg %p214
      $region34: #{tpu_custom_call.1} parent=5 // pred_check_branch
        %217 = sbr.rel (%p215) target = $region36
      $region35: #{tpu_custom_call.1} parent=5 // pred_region
        %s218 = ssub.s32 %s11, 2
        // Predicated region
        $region37: #{tpu_custom_call.1} parent=35 // pred_check
          %p219 = pneg %p92
        $region38: #{tpu_custom_call.1} parent=35 // pred_check_branch
          %221 = sbr.rel (%p219) target = $region40
        $region39: #{tpu_custom_call.1} parent=35 // pred_region
          %s222 = sand.u32 %s77, 1
          %s223 = scalar_lea.sflag [#allocation3], %s222
          %s224 = sand.u32 %s77, 1
          %s225 = scalar_lea.vmem [#allocation2], %s224
          %226 = dma.done %s223, 16
        $region40: #{tpu_custom_call.1} parent=35 // pred_fallthru
          _
      $region36: #{tpu_custom_call.1} parent=5 // pred_fallthru
        _
    $region6: #{tpu_custom_call.1} parent=1 // loop_footer
      %s15 = sadd.s32 1, %s11
    $region7: #{tpu_custom_call.1} parent=1 // loop_footer_branch
      %10 = sbr.rel target = $region3
    $region8: #{tpu_custom_call.1} parent=1 // loop_exit
      _
    %227 = vsyncpa [#allocation3], 1
    %s228 = scalar_lea.sflag [#allocation3], 1
    %229 = vsyncpa %s228, 1

</llo_original>
